<compile_context>
chip_gen: v7x
topology: tpu7x:2x2x1
jax: 0.10.0
libtpu: 0.0.40
codegen_flags: <defaults>
</compile_context>

<pallas_src>
import functools

import jax
import jax.numpy as jnp
from jax.experimental import pallas as pl
from jax.experimental.pallas import tpu as pltpu


# ----------------------------------------------------------------------------
# Kernel
# ----------------------------------------------------------------------------
def _pert_dropout_kernel(nf, tile_r, sublane, *refs):
    """Fused channel dropout for `nf` equal-shaped features.

    refs layout: [x_0, m0_0, m1_0, x_1, m0_1, m1_1, ...,  o0_0, o1_0, o0_1, ...]
      x_f  : (tile_r, tile_s) feature tile (read ONCE from HBM)
      m0_f : (mask_rows, 1) VMEM-resident scaled keep mask (bottom dropout)
      m1_f : (mask_rows, 1) VMEM-resident scaled keep mask (top dropout)
      o0_f / o1_f : (tile_r, tile_s) outputs for the two dropout probabilities
    """
    in_refs = refs[: 3 * nf]
    out_refs = refs[3 * nf:]

    start = pl.program_id(0) * tile_r
    if tile_r % sublane == 0:
        start = pl.multiple_of(start, sublane)

    for f in range(nf):
        x_ref = in_refs[3 * f]
        m0_ref = in_refs[3 * f + 1]
        m1_ref = in_refs[3 * f + 2]
        o0_ref = out_refs[2 * f]
        o1_ref = out_refs[2 * f + 1]

        x = x_ref[...]
        # (tile_r, 1) mask slices broadcast across lanes on the VPU.
        o0_ref[...] = x * m0_ref[pl.ds(start, tile_r), :]
        o1_ref[...] = x * m1_ref[pl.ds(start, tile_r), :]


# ----------------------------------------------------------------------------
# Tiling / VMEM heuristics
# ----------------------------------------------------------------------------
def _sublane(dtype):
    itemsize = jnp.dtype(dtype).itemsize
    return max(8, 32 // itemsize)  # 8 f32 / 16 bf16 / 32 int8-fp8


def _vmem_budgets():
    """(tile_budget_bytes, vmem_limit_bytes), generation-aware."""
    phys = None
    try:
        phys = int(pltpu.get_tpu_info().vmem_capacity_bytes)
    except Exception:
        phys = None
    if not phys:
        phys = 64 * 1024 * 1024  # conservative: v7x per-TC physical VMEM
    vmem_limit = min(64 * 1024 * 1024, (phys * 3) // 4)  # 64 MiB v5e/v6e, 48 MiB v7x
    tile_budget = vmem_limit // 2                        # 32 MiB / 24 MiB for live tiles
    return tile_budget, vmem_limit


def _choose_tiles(rows, spatial, itemsize, sublane, budget_bytes):
    """Pick (tile_r, tile_s) with no array padding required.

    Three streams per feature (x, out_bottom, out_top), each double-buffered
    by the BlockSpec pipeline -> ~6 live tiles per feature; keep their sum
    under `budget_bytes`.  Each block dim is either a multiple of the
    (sublane, 128) tiling or spans the full array dim.
    """
    per_tile = max(budget_bytes // 6, sublane * 128 * itemsize)

    # Lane (spatial) dim first: take the full extent if it fits with a
    # minimal row tile, otherwise the largest multiple of 128 that does.
    if spatial * sublane * itemsize <= per_tile:
        tile_s = spatial
    else:
        tile_s = (per_tile // (sublane * itemsize)) // 128 * 128
        tile_s = max(128, min(tile_s, (spatial // 128) * 128))

    # Row dim: grow from the remaining per-tile byte budget.
    max_r = per_tile // (tile_s * itemsize)
    if max_r >= rows:
        tile_r = rows
    else:
        tile_r = max(sublane, (max_r // sublane) * sublane)
    return tile_r, tile_s


# ----------------------------------------------------------------------------
# Wrapper: one fused pallas_call per group of equal-shaped 2-D feature slabs
# ----------------------------------------------------------------------------
def pert_dropout3d_group(x2d_list, m0_list, m1_list, *, tiles=None):
    """Apply BOTH channel-dropout masks to every slab in one pallas_call.

    x2d_list: list of (rows, S) slabs, all equal shape/dtype.
    m0_list / m1_list: per-slab (rows, 1) scaled keep masks.
    Returns (out_bottom_list, out_top_list).
    """
    nf = len(x2d_list)
    rows, S = x2d_list[0].shape
    dtype = x2d_list[0].dtype
    itemsize = jnp.dtype(dtype).itemsize
    sublane = _sublane(dtype)
    tile_budget, vmem_limit = _vmem_budgets()

    if tiles is None:
        tile_r, tile_s = _choose_tiles(rows, S, itemsize, sublane,
                                       max(tile_budget // nf, 1))
    else:
        tile_r, tile_s = tiles

    n_r = -(-rows // tile_r)
    n_s = -(-S // tile_s)

    # Masks are tiny; pad them (only them) to n_r*tile_r rows so the in-kernel
    # pl.ds window never leaves the resident mask buffer.
    mask_rows = n_r * tile_r

    def _pad_mask(m):
        if mask_rows != rows:
            return jnp.pad(m, ((0, mask_rows - rows), (0, 0)))
        return m

    x_spec = pl.BlockSpec((tile_r, tile_s), lambda i, j: (i, j))
    m_spec = pl.BlockSpec((mask_rows, 1), lambda i, j: (0, 0))  # VMEM-resident

    inputs, in_specs, out_shape, out_specs = [], [], [], []
    for f in range(nf):
        inputs += [x2d_list[f], _pad_mask(m0_list[f]), _pad_mask(m1_list[f])]
        in_specs += [x_spec, m_spec, m_spec]
        out_shape += [jax.ShapeDtypeStruct((rows, S), dtype)] * 2
        out_specs += [x_spec, x_spec]

    outs = pl.pallas_call(
        functools.partial(_pert_dropout_kernel, nf, tile_r, sublane),
        out_shape=tuple(out_shape),
        grid=(n_r, n_s),
        in_specs=in_specs,
        out_specs=tuple(out_specs),
        compiler_params=pltpu.CompilerParams(
            dimension_semantics=("parallel", "parallel"),
            vmem_limit_bytes=vmem_limit,
        ),
    )(*inputs)

    out_bottom = [outs[2 * f] for f in range(nf)]
    out_top = [outs[2 * f + 1] for f in range(nf)]
    return out_bottom, out_top


# ----------------------------------------------------------------------------
# Mask generation (host side, inside the jit; parity with the JAX reference)
# ----------------------------------------------------------------------------
def _make_channel_mask(key, n, c, p, dtype):
    """Per-(n,c) scaled keep mask, shape (n*c, 1): 0 where dropped, 1/(1-p) kept."""
    keep = jax.random.bernoulli(key, 1.0 - p, (n * c, 1)).astype(dtype)
    scale = jnp.asarray(0.0 if p >= 1.0 else 1.0 / (1.0 - p), dtype)
    return keep * scale


# ----------------------------------------------------------------------------
# Module
# ----------------------------------------------------------------------------
class PertDropoutPallas:
    """JAX/Pallas equivalent of PertDropout (type='dropout', i.e. Dropout3d)."""

    def __init__(self, p=0.5, type="dropout"):
        self.p = p
        self.top = 0.5 + p / 2.0
        self.bottom = 0.5 - p / 2.0
        # TODO(synk): 'alpha' (nn.AlphaDropout) and 'feature'
        # (nn.FeatureAlphaDropout) variants are not implemented; only the
        # default 'dropout' (Dropout3d channel dropout) path is provided.
        assert type == "dropout"
        self.ps = [self.bottom, self.top]  # same order as the PyTorch module
        self.len = len(self.ps)
        self._forward = jax.jit(self._forward_impl)

    def __len__(self):
        return self.len

    def _forward_impl(self, x_list, key):
        n_feats = len(x_list)

        # Per-feature scaled channel masks (same key derivation as before:
        # fold_in(key, j*10007 + i) for dropout j, feature i).
        # TODO(synk): masks could be generated in-kernel with
        # pltpu.prng_seed/prng_random_bits; kept host-side (inside this jit)
        # for exact parity with the pure-JAX reference.
        masks = []
        for i, feat in enumerate(x_list):
            N, C = feat.shape[0], feat.shape[1]
            k0 = jax.random.fold_in(key, 0 * 10007 + i)
            k1 = jax.random.fold_in(key, 1 * 10007 + i)
            masks.append((_make_channel_mask(k0, N, C, self.ps[0], feat.dtype),
                          _make_channel_mask(k1, N, C, self.ps[1], feat.dtype)))

        # Group equal (shape, dtype) features -> one fused pallas_call each
        # (no concat copies: separate refs sharing the same grid).
        groups = {}
        for i, feat in enumerate(x_list):
            groups.setdefault((feat.shape, jnp.dtype(feat.dtype).name), []).append(i)

        outs_bottom = [None] * n_feats
        outs_top = [None] * n_feats
        for (shape, _), idxs in groups.items():
            rows = shape[0] * shape[1]
            S = 1
            for d in shape[2:]:
                S *= d
            x2d_list = [x_list[i].reshape(rows, S) for i in idxs]  # free reshape
            m0_list = [masks[i][0] for i in idxs]
            m1_list = [masks[i][1] for i in idxs]
            o0_list, o1_list = pert_dropout3d_group(x2d_list, m0_list, m1_list)
            for gi, i in enumerate(idxs):
                outs_bottom[i] = o0_list[gi].reshape(shape)
                outs_top[i] = o1_list[gi].reshape(shape)

        # rst[dropout_idx][feat_idx], dropouts ordered [bottom, top].
        return [outs_bottom, outs_top]

    def __call__(self, x_list, key):
        return self._forward(tuple(x_list), key)


# ----------------------------------------------------------------------------
# Demo / self-check
# ----------------------------------------------------------------------------
if __name__ == "__main__":
    key = jax.random.PRNGKey(0)
    k_x0, k_x1, k_x2, k_drop = jax.random.split(key, 4)

    # Small 3-D feature maps (PyTorch NCDHW convention).  Two equal-shaped
    # features exercise the fused multi-feature launch; the third has a
    # misaligned spatial size (7^3 = 343, not a multiple of 128).
    x0 = jax.random.normal(k_x0, (2, 4, 8, 8, 8), dtype=jnp.float32)
    x1 = jax.random.normal(k_x1, (2, 4, 8, 8, 8), dtype=jnp.float32)
    x2 = jax.random.normal(k_x2, (2, 4, 7, 7, 7), dtype=jnp.float32)
    x_list = [x0, x1, x2]

    module = PertDropoutPallas(p=0.5, type="dropout")
    rst = module(x_list, k_drop)

    for single_type in rst:
        for out in single_type:
            jax.block_until_ready(out)

    # Sanity check vs. pure-JAX reference using the same masks.
    for j, pj in enumerate(module.ps):
        for i, feat in enumerate(x_list):
            N, C = feat.shape[0], feat.shape[1]
            k = jax.random.fold_in(k_drop, j * 10007 + i)
            mask = _make_channel_mask(k, N, C, pj, feat.dtype)
            ref = (feat.reshape(N * C, -1) * mask).reshape(feat.shape)
            assert jnp.allclose(rst[j][i], ref, atol=1e-6), (j, i)

    # Extra check: force small lane tiles on the misaligned-S feature so the
    # ragged boundary-block (masked write) path is exercised and matches.
    feat = x_list[2]
    N, C = feat.shape[0], feat.shape[1]
    m0 = _make_channel_mask(jax.random.fold_in(k_drop, 0 * 10007 + 2), N, C,
                            module.ps[0], feat.dtype)
    m1 = _make_channel_mask(jax.random.fold_in(k_drop, 1 * 10007 + 2), N, C,
                            module.ps[1], feat.dtype)
    (o0f,), (o1f,) = pert_dropout3d_group([feat.reshape(N * C, -1)], [m0], [m1],
                                          tiles=(8, 128))
    jax.block_until_ready(o0f)
    assert jnp.allclose(o0f.reshape(feat.shape), rst[0][2], atol=1e-6)
    assert jnp.allclose(o1f.reshape(feat.shape), rst[1][2], atol=1e-6)

    print("KERNEL_OK")
</pallas_src>

<mosaic_0001>
module attributes {stable_mosaic.version = 11 : i64} {
  func.func @_pert_dropout_kernel(%arg0: i32, %arg1: i32, %arg2: memref<8x512xf32, #tpu.memory_space<vmem>>, %arg3: memref<8x1xf32, #tpu.memory_space<vmem>>, %arg4: memref<8x1xf32, #tpu.memory_space<vmem>>, %arg5: memref<8x512xf32, #tpu.memory_space<vmem>>, %arg6: memref<8x1xf32, #tpu.memory_space<vmem>>, %arg7: memref<8x1xf32, #tpu.memory_space<vmem>>, %arg8: memref<8x512xf32, #tpu.memory_space<vmem>>, %arg9: memref<8x512xf32, #tpu.memory_space<vmem>>, %arg10: memref<8x512xf32, #tpu.memory_space<vmem>>, %arg11: memref<8x512xf32, #tpu.memory_space<vmem>>) attributes {dimension_semantics = [#tpu.dimension_semantics<parallel>, #tpu.dimension_semantics<parallel>], iteration_bounds = array<i64: 1, 1>, scalar_prefetch = 0 : i64, scratch_operands = 0 : i64, tpu.core_type = #tpu.core_type<tc>, window_params = [{transform_indices = @transform_0, window_bounds = array<i64: 8, 512>}, {pipeline_mode = #tpu.pipeline_mode<synchronous>, transform_indices = @transform_1, window_bounds = array<i64: 8, 1>}, {pipeline_mode = #tpu.pipeline_mode<synchronous>, transform_indices = @transform_2, window_bounds = array<i64: 8, 1>}, {transform_indices = @transform_3, window_bounds = array<i64: 8, 512>}, {pipeline_mode = #tpu.pipeline_mode<synchronous>, transform_indices = @transform_4, window_bounds = array<i64: 8, 1>}, {pipeline_mode = #tpu.pipeline_mode<synchronous>, transform_indices = @transform_5, window_bounds = array<i64: 8, 1>}, {transform_indices = @transform_6, window_bounds = array<i64: 8, 512>}, {transform_indices = @transform_7, window_bounds = array<i64: 8, 512>}, {transform_indices = @transform_8, window_bounds = array<i64: 8, 512>}, {transform_indices = @transform_9, window_bounds = array<i64: 8, 512>}]} {
    %c8_i32 = arith.constant 8 : i32
    %0 = arith.muli %arg0, %c8_i32 : i32
    %1 = tpu.assume_multiple %0, 8 : i32
    %c0 = arith.constant 0 : index
    %c0_0 = arith.constant 0 : index
    %2 = vector.load %arg2[%c0, %c0_0] : memref<8x512xf32, #tpu.memory_space<vmem>>, vector<8x512xf32>
    %3 = arith.index_cast %1 : i32 to index
    %c0_1 = arith.constant 0 : index
    %4 = vector.load %arg3[%3, %c0_1] : memref<8x1xf32, #tpu.memory_space<vmem>>, vector<8x1xf32>
    %5 = vector.broadcast %4 : vector<8x1xf32> to vector<8x512xf32>
    %6 = arith.mulf %2, %5 : vector<8x512xf32>
    %c0_2 = arith.constant 0 : index
    %c0_3 = arith.constant 0 : index
    %7 = vector.load %arg8[%c0_2, %c0_3] : memref<8x512xf32, #tpu.memory_space<vmem>>, vector<8x512xf32>
    tpu.vector_store %arg8[%c0_2, %c0_3], %6 {strides = array<i32>} : memref<8x512xf32, #tpu.memory_space<vmem>>, vector<8x512xf32>,
    %8 = arith.index_cast %1 : i32 to index
    %c0_4 = arith.constant 0 : index
    %9 = vector.load %arg4[%8, %c0_4] : memref<8x1xf32, #tpu.memory_space<vmem>>, vector<8x1xf32>
    %10 = vector.broadcast %9 : vector<8x1xf32> to vector<8x512xf32>
    %11 = arith.mulf %2, %10 : vector<8x512xf32>
    %c0_5 = arith.constant 0 : index
    %c0_6 = arith.constant 0 : index
    %12 = vector.load %arg9[%c0_5, %c0_6] : memref<8x512xf32, #tpu.memory_space<vmem>>, vector<8x512xf32>
    tpu.vector_store %arg9[%c0_5, %c0_6], %11 {strides = array<i32>} : memref<8x512xf32, #tpu.memory_space<vmem>>, vector<8x512xf32>,
    %c0_7 = arith.constant 0 : index
    %c0_8 = arith.constant 0 : index
    %13 = vector.load %arg5[%c0_7, %c0_8] : memref<8x512xf32, #tpu.memory_space<vmem>>, vector<8x512xf32>
    %14 = arith.index_cast %1 : i32 to index
    %c0_9 = arith.constant 0 : index
    %15 = vector.load %arg6[%14, %c0_9] : memref<8x1xf32, #tpu.memory_space<vmem>>, vector<8x1xf32>
    %16 = vector.broadcast %15 : vector<8x1xf32> to vector<8x512xf32>
    %17 = arith.mulf %13, %16 : vector<8x512xf32>
    %c0_10 = arith.constant 0 : index
    %c0_11 = arith.constant 0 : index
    %18 = vector.load %arg10[%c0_10, %c0_11] : memref<8x512xf32, #tpu.memory_space<vmem>>, vector<8x512xf32>
    tpu.vector_store %arg10[%c0_10, %c0_11], %17 {strides = array<i32>} : memref<8x512xf32, #tpu.memory_space<vmem>>, vector<8x512xf32>,
    %19 = arith.index_cast %1 : i32 to index
    %c0_12 = arith.constant 0 : index
    %20 = vector.load %arg7[%19, %c0_12] : memref<8x1xf32, #tpu.memory_space<vmem>>, vector<8x1xf32>
    %21 = vector.broadcast %20 : vector<8x1xf32> to vector<8x512xf32>
    %22 = arith.mulf %13, %21 : vector<8x512xf32>
    %c0_13 = arith.constant 0 : index
    %c0_14 = arith.constant 0 : index
    %23 = vector.load %arg11[%c0_13, %c0_14] : memref<8x512xf32, #tpu.memory_space<vmem>>, vector<8x512xf32>
    tpu.vector_store %arg11[%c0_13, %c0_14], %22 {strides = array<i32>} : memref<8x512xf32, #tpu.memory_space<vmem>>, vector<8x512xf32>,
    return
  }
  func.func @transform_0(%arg0: i32, %arg1: i32) -> (i32, i32) {
    %c0_i32 = arith.constant 0 : i32
    return %arg0, %arg1 : i32, i32
  }
  func.func @transform_1(%arg0: i32, %arg1: i32) -> (i32, i32) {
    %c0_i32 = arith.constant 0 : i32
    %c0_i32_0 = arith.constant 0 : i32
    %c0_i32_1 = arith.constant 0 : i32
    return %c0_i32, %c0_i32_0 : i32, i32
  }
  func.func @transform_2(%arg0: i32, %arg1: i32) -> (i32, i32) {
    %c0_i32 = arith.constant 0 : i32
    %c0_i32_0 = arith.constant 0 : i32
    %c0_i32_1 = arith.constant 0 : i32
    return %c0_i32, %c0_i32_0 : i32, i32
  }
  func.func @transform_3(%arg0: i32, %arg1: i32) -> (i32, i32) {
    %c0_i32 = arith.constant 0 : i32
    return %arg0, %arg1 : i32, i32
  }
  func.func @transform_4(%arg0: i32, %arg1: i32) -> (i32, i32) {
    %c0_i32 = arith.constant 0 : i32
    %c0_i32_0 = arith.constant 0 : i32
    %c0_i32_1 = arith.constant 0 : i32
    return %c0_i32, %c0_i32_0 : i32, i32
  }
  func.func @transform_5(%arg0: i32, %arg1: i32) -> (i32, i32) {
    %c0_i32 = arith.constant 0 : i32
    %c0_i32_0 = arith.constant 0 : i32
    %c0_i32_1 = arith.constant 0 : i32
    return %c0_i32, %c0_i32_0 : i32, i32
  }
  func.func @transform_6(%arg0: i32, %arg1: i32) -> (i32, i32) {
    %c0_i32 = arith.constant 0 : i32
    return %arg0, %arg1 : i32, i32
  }
  func.func @transform_7(%arg0: i32, %arg1: i32) -> (i32, i32) {
    %c0_i32 = arith.constant 0 : i32
    return %arg0, %arg1 : i32, i32
  }
  func.func @transform_8(%arg0: i32, %arg1: i32) -> (i32, i32) {
    %c0_i32 = arith.constant 0 : i32
    return %arg0, %arg1 : i32, i32
  }
  func.func @transform_9(%arg0: i32, %arg1: i32) -> (i32, i32) {
    %c0_i32 = arith.constant 0 : i32
    return %arg0, %arg1 : i32, i32
  }
}

module attributes {stable_mosaic.version = 11 : i64} {
  func.func @_pert_dropout_kernel(%arg0: i32, %arg1: i32, %arg2: memref<8x343xf32, #tpu.memory_space<vmem>>, %arg3: memref<8x1xf32, #tpu.memory_space<vmem>>, %arg4: memref<8x1xf32, #tpu.memory_space<vmem>>, %arg5: memref<8x343xf32, #tpu.memory_space<vmem>>, %arg6: memref<8x343xf32, #tpu.memory_space<vmem>>) attributes {dimension_semantics = [#tpu.dimension_semantics<parallel>, #tpu.dimension_semantics<parallel>], iteration_bounds = array<i64: 1, 1>, scalar_prefetch = 0 : i64, scratch_operands = 0 : i64, tpu.core_type = #tpu.core_type<tc>, window_params = [{transform_indices = @transform_0, window_bounds = array<i64: 8, 343>}, {pipeline_mode = #tpu.pipeline_mode<synchronous>, transform_indices = @transform_1, window_bounds = array<i64: 8, 1>}, {pipeline_mode = #tpu.pipeline_mode<synchronous>, transform_indices = @transform_2, window_bounds = array<i64: 8, 1>}, {transform_indices = @transform_3, window_bounds = array<i64: 8, 343>}, {transform_indices = @transform_4, window_bounds = array<i64: 8, 343>}]} {
    %c8_i32 = arith.constant 8 : i32
    %0 = arith.muli %arg0, %c8_i32 : i32
    %1 = tpu.assume_multiple %0, 8 : i32
    %c0 = arith.constant 0 : index
    %c0_0 = arith.constant 0 : index
    %2 = vector.load %arg2[%c0, %c0_0] : memref<8x343xf32, #tpu.memory_space<vmem>>, vector<8x343xf32>
    %3 = arith.index_cast %1 : i32 to index
    %c0_1 = arith.constant 0 : index
    %4 = vector.load %arg3[%3, %c0_1] : memref<8x1xf32, #tpu.memory_space<vmem>>, vector<8x1xf32>
    %5 = vector.broadcast %4 : vector<8x1xf32> to vector<8x343xf32>
    %6 = arith.mulf %2, %5 : vector<8x343xf32>
    %c0_2 = arith.constant 0 : index
    %c0_3 = arith.constant 0 : index
    %7 = vector.load %arg5[%c0_2, %c0_3] : memref<8x343xf32, #tpu.memory_space<vmem>>, vector<8x343xf32>
    tpu.vector_store %arg5[%c0_2, %c0_3], %6 {strides = array<i32>} : memref<8x343xf32, #tpu.memory_space<vmem>>, vector<8x343xf32>,
    %8 = arith.index_cast %1 : i32 to index
    %c0_4 = arith.constant 0 : index
    %9 = vector.load %arg4[%8, %c0_4] : memref<8x1xf32, #tpu.memory_space<vmem>>, vector<8x1xf32>
    %10 = vector.broadcast %9 : vector<8x1xf32> to vector<8x343xf32>
    %11 = arith.mulf %2, %10 : vector<8x343xf32>
    %c0_5 = arith.constant 0 : index
    %c0_6 = arith.constant 0 : index
    %12 = vector.load %arg6[%c0_5, %c0_6] : memref<8x343xf32, #tpu.memory_space<vmem>>, vector<8x343xf32>
    tpu.vector_store %arg6[%c0_5, %c0_6], %11 {strides = array<i32>} : memref<8x343xf32, #tpu.memory_space<vmem>>, vector<8x343xf32>,
    return
  }
  func.func @transform_0(%arg0: i32, %arg1: i32) -> (i32, i32) {
    %c0_i32 = arith.constant 0 : i32
    return %arg0, %arg1 : i32, i32
  }
  func.func @transform_1(%arg0: i32, %arg1: i32) -> (i32, i32) {
    %c0_i32 = arith.constant 0 : i32
    %c0_i32_0 = arith.constant 0 : i32
    %c0_i32_1 = arith.constant 0 : i32
    return %c0_i32, %c0_i32_0 : i32, i32
  }
  func.func @transform_2(%arg0: i32, %arg1: i32) -> (i32, i32) {
    %c0_i32 = arith.constant 0 : i32
    %c0_i32_0 = arith.constant 0 : i32
    %c0_i32_1 = arith.constant 0 : i32
    return %c0_i32, %c0_i32_0 : i32, i32
  }
  func.func @transform_3(%arg0: i32, %arg1: i32) -> (i32, i32) {
    %c0_i32 = arith.constant 0 : i32
    return %arg0, %arg1 : i32, i32
  }
  func.func @transform_4(%arg0: i32, %arg1: i32) -> (i32, i32) {
    %c0_i32 = arith.constant 0 : i32
    return %arg0, %arg1 : i32, i32
  }
}

</mosaic_0001>

<llo_original>
// kernel: _forward_impl.2
$region0: #{_forward_impl.2}
  #allocation0 [shape = 'u32[]', space=smem, size = 0x4, offset = 0x4, fixed_abs, tag = 'smem constant byte address 0x4 - core index']
  #allocation1 [shape = 'u32[144,128]{1,0:T(1,128)}', space=vmem, size = 0x12000, scoped, tag = 'internal scratch']
  %s0 = inlined_call_operand.vmem [shape: f32[8,512], index: 0, kind: input, shape index: {}]
  %s1 = inlined_call_operand.vmem [shape: f32[8,1], index: 1, kind: input, shape index: {}]
  %s2 = inlined_call_operand.vmem [shape: f32[8,1], index: 2, kind: input, shape index: {}]
  %s3 = inlined_call_operand.vmem [shape: f32[8,512], index: 3, kind: input, shape index: {}]
  %s4 = inlined_call_operand.vmem [shape: f32[8,1], index: 4, kind: input, shape index: {}]
  %s5 = inlined_call_operand.vmem [shape: f32[8,1], index: 5, kind: input, shape index: {}]
  %s6 = inlined_call_operand.vmem [shape: f32[8,512], index: 6, kind: output, shape index: {0}]
  %s7 = inlined_call_operand.vmem [shape: f32[8,512], index: 7, kind: output, shape index: {1}]
  %s8 = inlined_call_operand.vmem [shape: f32[8,512], index: 8, kind: output, shape index: {2}]
  %s9 = inlined_call_operand.vmem [shape: f32[8,512], index: 9, kind: output, shape index: {3}]
  %10 = xla_tuple %s6, %s7, %s8, %s9
  %s11 = sld [smem:[#allocation0]]
  $region58: #{_forward_impl.2} parent=0
    _
  %s13 = ssub.s32 1, %s11
  %s14 = scalar_select 0, %s13, %s11
  // Predicated region
  $region2: #{_forward_impl.2} parent=0 // pred_check
    _
  $region3: #{_forward_impl.2} parent=0 // pred_check_branch
    %16 = sbr.rel (0) target = $region5
  $region4: #{_forward_impl.2} parent=0 // pred_region
    _
  $region5: #{_forward_impl.2} parent=0 // pred_fallthru
    _
  // Predicated region
  $region6: #{_forward_impl.2} parent=0 // pred_check
    _
  $region7: #{_forward_impl.2} parent=0 // pred_check_branch
    %18 = sbr.rel (0) target = $region9
  $region8: #{_forward_impl.2} parent=0 // pred_region
    _
  $region9: #{_forward_impl.2} parent=0 // pred_fallthru
    _
  // Predicated region
  $region10: #{_forward_impl.2} parent=0 // pred_check
    _
  $region11: #{_forward_impl.2} parent=0 // pred_check_branch
    %20 = sbr.rel (0) target = $region13
  $region12: #{_forward_impl.2} parent=0 // pred_region
    _
  $region13: #{_forward_impl.2} parent=0 // pred_fallthru
    _
  // Predicated region
  $region14: #{_forward_impl.2} parent=0 // pred_check
    _
  $region15: #{_forward_impl.2} parent=0 // pred_check_branch
    %22 = sbr.rel (0) target = $region17
  $region16: #{_forward_impl.2} parent=0 // pred_region
    _
  $region17: #{_forward_impl.2} parent=0 // pred_fallthru
    _
  // Predicated region
  $region18: #{_forward_impl.2} parent=0 // pred_check
    _
  $region19: #{_forward_impl.2} parent=0 // pred_check_branch
    %24 = sbr.rel (0) target = $region21
  $region20: #{_forward_impl.2} parent=0 // pred_region
    _
  $region21: #{_forward_impl.2} parent=0 // pred_fallthru
    _
  // Predicated region
  $region22: #{_forward_impl.2} parent=0 // pred_check
    _
  $region23: #{_forward_impl.2} parent=0 // pred_check_branch
    %26 = sbr.rel (0) target = $region25
  $region24: #{_forward_impl.2} parent=0 // pred_region
    _
  $region25: #{_forward_impl.2} parent=0 // pred_fallthru
    _
  %s27 = smul.u32 0, 8
  %v28 = vld [vmem:[%s0] sm:$0xff]
  %v29 = vld [vmem:[%s0 + $0x8] sm:$0xff]
  %v30 = vld [vmem:[%s0 + $0x10] sm:$0xff]
  %v31 = vld [vmem:[%s0 + $0x18] sm:$0xff]
  %s32 = scalar_lea.vmem %s1, %s27
  %v33 = vld [vmem:[%s32] sm:$0xff]
  %35 = vset.pattern.permute.xlu0 0
  %36 = vperm.xlu0 %35, %v33
  %v37 = vpop.permute.xlu0 %36
  %v39 = vmul.f32 %v28, %v37
  %v40 = vmul.f32 %v29, %v37
  %v41 = vmul.f32 %v30, %v37
  %v42 = vmul.f32 %v31, %v37
  %43 = vst [vmem:[%s6] sm:$0xff] %v39
  %44 = vst [vmem:[%s6 + $0x8] sm:$0xff] %v40
  %45 = vst [vmem:[%s6 + $0x10] sm:$0xff] %v41
  %46 = vst [vmem:[%s6 + $0x18] sm:$0xff] %v42
  %s47 = scalar_lea.vmem %s2, %s27
  %v48 = vld [vmem:[%s47] sm:$0xff]
  %50 = vset.pattern.permute.xlu0 0
  %51 = vperm.xlu0 %50, %v48
  %v52 = vpop.permute.xlu0 %51
  %v54 = vmul.f32 %v28, %v52
  %v55 = vmul.f32 %v29, %v52
  %v56 = vmul.f32 %v30, %v52
  %v57 = vmul.f32 %v31, %v52
  %58 = vst [vmem:[%s7] sm:$0xff] %v54
  %59 = vst [vmem:[%s7 + $0x8] sm:$0xff] %v55
  %60 = vst [vmem:[%s7 + $0x10] sm:$0xff] %v56
  %61 = vst [vmem:[%s7 + $0x18] sm:$0xff] %v57
  %v62 = vld [vmem:[%s3] sm:$0xff]
  %v63 = vld [vmem:[%s3 + $0x8] sm:$0xff]
  %v64 = vld [vmem:[%s3 + $0x10] sm:$0xff]
  %v65 = vld [vmem:[%s3 + $0x18] sm:$0xff]
  %s66 = scalar_lea.vmem %s4, %s27
  %v67 = vld [vmem:[%s66] sm:$0xff]
  %69 = vset.pattern.permute.xlu0 0
  %70 = vperm.xlu0 %69, %v67
  %v71 = vpop.permute.xlu0 %70
  %v73 = vmul.f32 %v62, %v71
  %v74 = vmul.f32 %v63, %v71
  %v75 = vmul.f32 %v64, %v71
  %v76 = vmul.f32 %v65, %v71
  %77 = vst [vmem:[%s8] sm:$0xff] %v73
  %78 = vst [vmem:[%s8 + $0x8] sm:$0xff] %v74
  %79 = vst [vmem:[%s8 + $0x10] sm:$0xff] %v75
  %80 = vst [vmem:[%s8 + $0x18] sm:$0xff] %v76
  %s81 = scalar_lea.vmem %s5, %s27
  %v82 = vld [vmem:[%s81] sm:$0xff]
  %84 = vset.pattern.permute.xlu0 0
  %85 = vperm.xlu0 %84, %v82
  %v86 = vpop.permute.xlu0 %85
  %v88 = vmul.f32 %v62, %v86
  %v89 = vmul.f32 %v63, %v86
  %v90 = vmul.f32 %v64, %v86
  %v91 = vmul.f32 %v65, %v86
  %92 = vst [vmem:[%s9] sm:$0xff] %v88
  %93 = vst [vmem:[%s9 + $0x8] sm:$0xff] %v89
  %94 = vst [vmem:[%s9 + $0x10] sm:$0xff] %v90
  %95 = vst [vmem:[%s9 + $0x18] sm:$0xff] %v91
  // Predicated region
  $region26: #{_forward_impl.2} parent=0 // pred_check
    _
  $region27: #{_forward_impl.2} parent=0 // pred_check_branch
    %97 = sbr.rel (0) target = $region29
  $region28: #{_forward_impl.2} parent=0 // pred_region
    _
  $region29: #{_forward_impl.2} parent=0 // pred_fallthru
    _
  // Predicated region
  $region30: #{_forward_impl.2} parent=0 // pred_check
    _
  $region31: #{_forward_impl.2} parent=0 // pred_check_branch
    %99 = sbr.rel (0) target = $region33
  $region32: #{_forward_impl.2} parent=0 // pred_region
    _
  $region33: #{_forward_impl.2} parent=0 // pred_fallthru
    _
  // Predicated region
  $region34: #{_forward_impl.2} parent=0 // pred_check
    _
  $region35: #{_forward_impl.2} parent=0 // pred_check_branch
    %101 = sbr.rel (0) target = $region37
  $region36: #{_forward_impl.2} parent=0 // pred_region
    _
  $region37: #{_forward_impl.2} parent=0 // pred_fallthru
    _
  // Predicated region
  $region38: #{_forward_impl.2} parent=0 // pred_check
    _
  $region39: #{_forward_impl.2} parent=0 // pred_check_branch
    %103 = sbr.rel (0) target = $region41
  $region40: #{_forward_impl.2} parent=0 // pred_region
    _
  $region41: #{_forward_impl.2} parent=0 // pred_fallthru
    _
  // Predicated region
  $region42: #{_forward_impl.2} parent=0 // pred_check
    _
  $region43: #{_forward_impl.2} parent=0 // pred_check_branch
    %105 = sbr.rel (0) target = $region45
  $region44: #{_forward_impl.2} parent=0 // pred_region
    _
  $region45: #{_forward_impl.2} parent=0 // pred_fallthru
    _
  // Predicated region
  $region46: #{_forward_impl.2} parent=0 // pred_check
    _
  $region47: #{_forward_impl.2} parent=0 // pred_check_branch
    %107 = sbr.rel (0) target = $region49
  $region48: #{_forward_impl.2} parent=0 // pred_region
    _
  $region49: #{_forward_impl.2} parent=0 // pred_fallthru
    _
  // Predicated region
  $region50: #{_forward_impl.2} parent=0 // pred_check
    _
  $region51: #{_forward_impl.2} parent=0 // pred_check_branch
    %109 = sbr.rel (0) target = $region53
  $region52: #{_forward_impl.2} parent=0 // pred_region
    _
  $region53: #{_forward_impl.2} parent=0 // pred_fallthru
    _
  // Predicated region
  $region54: #{_forward_impl.2} parent=0 // pred_check
    _
  $region55: #{_forward_impl.2} parent=0 // pred_check_branch
    %111 = sbr.rel (0) target = $region57
  $region56: #{_forward_impl.2} parent=0 // pred_region
    _
  $region57: #{_forward_impl.2} parent=0 // pred_fallthru
    _

// kernel: _forward_impl.3
$region0: #{_forward_impl.3}
  #allocation0 [shape = 'u32[]', space=smem, size = 0x4, offset = 0x4, fixed_abs, tag = 'smem constant byte address 0x4 - core index']
  #allocation1 [shape = 'u32[144,128]{1,0:T(1,128)}', space=vmem, size = 0x12000, scoped, tag = 'internal scratch']
  %s0 = inlined_call_operand.vmem [shape: f32[8,343], index: 0, kind: input, shape index: {}]
  %s1 = inlined_call_operand.vmem [shape: f32[8,1], index: 1, kind: input, shape index: {}]
  %s2 = inlined_call_operand.vmem [shape: f32[8,1], index: 2, kind: input, shape index: {}]
  %s3 = inlined_call_operand.vmem [shape: f32[8,343], index: 3, kind: output, shape index: {0}]
  %s4 = inlined_call_operand.vmem [shape: f32[8,343], index: 4, kind: output, shape index: {1}]
  %5 = xla_tuple %s3, %s4
  %s6 = sld [smem:[#allocation0]]
  $region30: #{_forward_impl.3} parent=0
    _
  %s8 = ssub.s32 1, %s6
  %s9 = scalar_select 0, %s8, %s6
  // Predicated region
  $region2: #{_forward_impl.3} parent=0 // pred_check
    _
  $region3: #{_forward_impl.3} parent=0 // pred_check_branch
    %11 = sbr.rel (0) target = $region5
  $region4: #{_forward_impl.3} parent=0 // pred_region
    _
  $region5: #{_forward_impl.3} parent=0 // pred_fallthru
    _
  // Predicated region
  $region6: #{_forward_impl.3} parent=0 // pred_check
    _
  $region7: #{_forward_impl.3} parent=0 // pred_check_branch
    %13 = sbr.rel (0) target = $region9
  $region8: #{_forward_impl.3} parent=0 // pred_region
    _
  $region9: #{_forward_impl.3} parent=0 // pred_fallthru
    _
  // Predicated region
  $region10: #{_forward_impl.3} parent=0 // pred_check
    _
  $region11: #{_forward_impl.3} parent=0 // pred_check_branch
    %15 = sbr.rel (0) target = $region13
  $region12: #{_forward_impl.3} parent=0 // pred_region
    _
  $region13: #{_forward_impl.3} parent=0 // pred_fallthru
    _
  %s16 = smul.u32 0, 8
  %v17 = vld [vmem:[%s0] sm:$0xff]
  %v18 = vld [vmem:[%s0 + $0x8] sm:$0xff]
  %v19 = vld [vmem:[%s0 + $0x10] sm:$0xff]
  %s20 = scalar_lea.vmem %s1, %s16
  %v21 = vld [vmem:[%s20] sm:$0xff]
  %23 = vset.pattern.permute.xlu0 0
  %24 = vperm.xlu0 %23, %v21
  %v25 = vpop.permute.xlu0 %24
  %v27 = vmul.f32 %v17, %v25
  %v28 = vmul.f32 %v18, %v25
  %v29 = vmul.f32 %v19, %v25
  %30 = vst [vmem:[%s3] sm:$0xff] %v27
  %31 = vst [vmem:[%s3 + $0x8] sm:$0xff] %v28
  %vm32 = vcmask 711680
  %33 = vst.msk [vmem:[%s3 + $0x10] sm:$0xff] %vm32, %v29
  %s34 = scalar_lea.vmem %s2, %s16
  %v35 = vld [vmem:[%s34] sm:$0xff]
  %37 = vset.pattern.permute.xlu0 0
  %38 = vperm.xlu0 %37, %v35
  %v39 = vpop.permute.xlu0 %38
  %v41 = vmul.f32 %v17, %v39
  %v42 = vmul.f32 %v18, %v39
  %v43 = vmul.f32 %v19, %v39
  %44 = vst [vmem:[%s4] sm:$0xff] %v41
  %45 = vst [vmem:[%s4 + $0x8] sm:$0xff] %v42
  %46 = vst.msk [vmem:[%s4 + $0x10] sm:$0xff] %vm32, %v43
  // Predicated region
  $region14: #{_forward_impl.3} parent=0 // pred_check
    _
  $region15: #{_forward_impl.3} parent=0 // pred_check_branch
    %48 = sbr.rel (0) target = $region17
  $region16: #{_forward_impl.3} parent=0 // pred_region
    _
  $region17: #{_forward_impl.3} parent=0 // pred_fallthru
    _
  // Predicated region
  $region18: #{_forward_impl.3} parent=0 // pred_check
    _
  $region19: #{_forward_impl.3} parent=0 // pred_check_branch
    %50 = sbr.rel (0) target = $region21
  $region20: #{_forward_impl.3} parent=0 // pred_region
    _
  $region21: #{_forward_impl.3} parent=0 // pred_fallthru
    _
  // Predicated region
  $region22: #{_forward_impl.3} parent=0 // pred_check
    _
  $region23: #{_forward_impl.3} parent=0 // pred_check_branch
    %52 = sbr.rel (0) target = $region25
  $region24: #{_forward_impl.3} parent=0 // pred_region
    _
  $region25: #{_forward_impl.3} parent=0 // pred_fallthru
    _
  // Predicated region
  $region26: #{_forward_impl.3} parent=0 // pred_check
    _
  $region27: #{_forward_impl.3} parent=0 // pred_check_branch
    %54 = sbr.rel (0) target = $region29
  $region28: #{_forward_impl.3} parent=0 // pred_region
    _
  $region29: #{_forward_impl.3} parent=0 // pred_fallthru
    _

</llo_original>
